<compile_context>
chip_gen: v7x
topology: tpu7x:2x2x1
jax: 0.10.0
libtpu: 0.0.40
codegen_flags: <defaults>
</compile_context>

<pallas_src>
import math
import functools

import jax
import jax.numpy as jnp
from jax.experimental import pallas as pl
from jax.experimental.pallas import tpu as pltpu


def _gaussian_taps_1d(size, sigma):
    """Normalized 1-D Gaussian taps as Python floats (sum == 1)."""
    mean = (size - 1) / 2.0
    taps = [math.exp(-(((i - mean) / sigma) ** 2) / 2.0) for i in range(size)]
    s = sum(taps)
    return tuple(t / s for t in taps)


def make_gaussian_weight(channels, kernel_size, sigma, dim=3):
    """Mirror of GaussianSmoothing.__init__ weight construction (used for the reference)."""
    if isinstance(kernel_size, (int, float)):
        kernel_size = [int(kernel_size)] * dim
    if isinstance(sigma, (int, float)):
        sigma = [float(sigma)] * dim
    grids = jnp.meshgrid(
        *[jnp.arange(s, dtype=jnp.float32) for s in kernel_size], indexing="ij"
    )
    kernel = jnp.ones((), dtype=jnp.float32)
    for size, std, mgrid in zip(kernel_size, sigma, grids):
        mean = (size - 1) / 2.0
        kernel = kernel * (1.0 / (std * math.sqrt(2.0 * math.pi))) * jnp.exp(
            -(((mgrid - mean) / std) ** 2) / 2.0
        )
    kernel = kernel / jnp.sum(kernel)
    weight = jnp.broadcast_to(kernel[None, None], (channels, 1) + kernel.shape)
    return weight.astype(jnp.float32)


def _gauss3d_sep_kernel(x_ref, o_ref, *, gd, gh, gw, row_w, hw_pad):
    """Separable depthwise 3-D VALID Gaussian conv on a lane-flattened slab.

    x_ref: VMEM (ncb, D,  HWp)  -- HWp = padded H*W on the lane axis.
    o_ref: VMEM (ncb, Do, HWp)
    gd/gh/gw: Python-float taps for the D/H/W axes (each sums to 1).
    row_w: W (row stride inside the flattened H*W axis); hw_pad: HWp.

    Valid outputs live at lane position h*W + w (h < Ho, w < Wo); those never read
    wrapped/padded lanes, so the rolls below are exact for them.  Everything else is
    garbage and is sliced away in the wrapper.
    """
    _, Do, _ = o_ref.shape

    # Pass 1 -- D (sublane axis): static sublane-offset slices, f32 cast fused per tap.
    acc = gd[0] * x_ref[:, 0:Do, :].astype(jnp.float32)
    for i in range(1, len(gd)):
        acc = acc + gd[i] * x_ref[:, i:i + Do, :].astype(jnp.float32)

    # Pass 2 -- H: lane roll by j*W on the flattened H*W axis (XLU; VALU only mul/add).
    # pltpu.roll(x, s)[i] == x[(i - s) % n], so shift = HWp - j*W gives x[i + j*W].
    y = gh[0] * acc
    for j in range(1, len(gh)):
        y = y + gh[j] * pltpu.roll(acc, shift=hw_pad - j * row_w, axis=2)

    # Pass 3 -- W: lane roll by k (runs last, on the D-shrunk volume).
    z = gw[0] * y
    for k in range(1, len(gw)):
        z = z + gw[k] * pltpu.roll(y, shift=hw_pad - k, axis=2)

    o_ref[...] = z.astype(o_ref.dtype)


def gaussian_smoothing(x, kernel_size, sigma):
    """x: (N, C, D, H, W). Depthwise Gaussian conv3d, VALID padding (== F.conv3d(groups=C))."""
    N, C, D, H, W = x.shape
    if isinstance(kernel_size, (int, float)):
        kernel_size = [int(kernel_size)] * 3
    if isinstance(sigma, (int, float)):
        sigma = [float(sigma)] * 3
    kd, kh, kw = (int(k) for k in kernel_size)
    gd = _gaussian_taps_1d(kd, float(sigma[0]))
    gh = _gaussian_taps_1d(kh, float(sigma[1]))
    gw = _gaussian_taps_1d(kw, float(sigma[2]))
    Do, Ho, Wo = D - kd + 1, H - kh + 1, W - kw + 1

    NC = N * C
    HW = H * W
    # Transpose-free relayout: contiguous reshape puts H*W on the lane axis.
    x_flat = x.reshape(NC, D, HW)

    # Pad the lane axis to a multiple of 128 -> lane-dense vregs, unmasked stores.
    HWp = ((HW + 127) // 128) * 128
    if HWp != HW:
        x_flat = jnp.pad(x_flat, ((0, 0), (0, 0), (0, HWp - HW)))

    # Channel-block size: as large as a modest per-step VMEM budget allows, but keep
    # >= 2 grid steps when possible (v7x megacore; free on v5e/v6e).
    itemsize = jnp.dtype(x.dtype).itemsize
    per_ch_bytes = (2 * D * HWp * itemsize          # double-buffered input block
                    + 2 * Do * HWp * itemsize       # double-buffered output block
                    + 4 * D * HWp * 4)              # f32 intermediates (acc, y, z, slack)
    budget = 8 * 1024 * 1024
    ncb = max(1, min(NC, budget // max(per_ch_bytes, 1)))
    if NC >= 2 and NC // ncb < 2:
        ncb = NC // 2
    while NC % ncb:
        ncb -= 1
    grid = (NC // ncb,)

    # VMEM limit derived from the real footprint (clamped well under v7x's 64 MiB/TC).
    vmem_limit = int(min(48 * 1024 * 1024,
                         max(4 * 1024 * 1024, ncb * per_ch_bytes + 2 * 1024 * 1024)))

    kern = functools.partial(_gauss3d_sep_kernel, gd=gd, gh=gh, gw=gw,
                             row_w=W, hw_pad=HWp)

    out_flat = pl.pallas_call(
        kern,
        out_shape=jax.ShapeDtypeStruct((NC, Do, HWp), x.dtype),
        grid=grid,
        in_specs=[pl.BlockSpec((ncb, D, HWp), lambda c: (c, 0, 0))],
        out_specs=pl.BlockSpec((ncb, Do, HWp), lambda c: (c, 0, 0)),
        compiler_params=pltpu.CompilerParams(
            dimension_semantics=("parallel",),
            vmem_limit_bytes=vmem_limit,
        ),
    )(x_flat)

    # Extract the valid (Ho, Wo) window: free reshape + one output-sized slice
    # (replaces the previous two full HBM transposes).
    out = out_flat[:, :, :HW].reshape(N, C, Do, H, W)[:, :, :, :Ho, :Wo]
    return out


if __name__ == "__main__":
    key = jax.random.PRNGKey(0)
    N, C, D, H, W = 2, 4, 8, 16, 16
    kernel_size, sigma = 3, 1.0

    x = jax.random.normal(key, (N, C, D, H, W), dtype=jnp.float32)

    out = gaussian_smoothing(x, kernel_size, sigma)
    out = jax.block_until_ready(out)

    # Reference: XLA grouped (depthwise) conv3d with the module's weight construction,
    # identical semantics to F.conv3d(weight, groups=C).
    weight = make_gaussian_weight(C, kernel_size, sigma, dim=3)
    ref = jax.lax.conv_general_dilated(
        x,
        weight,
        window_strides=(1, 1, 1),
        padding="VALID",
        dimension_numbers=("NCDHW", "OIDHW", "NCDHW"),
        feature_group_count=C,
    )
    assert out.shape == ref.shape == (N, C, D - 2, H - 2, W - 2)
    assert jnp.allclose(out, ref, atol=5e-5, rtol=5e-5)

    print("KERNEL_OK")
</pallas_src>

<mosaic_0001>
module attributes {stable_mosaic.version = 11 : i64} {
  func.func @_gauss3d_sep_kernel(%arg0: i32, %arg1: memref<4x8x256xf32, #tpu.memory_space<vmem>>, %arg2: memref<4x6x256xf32, #tpu.memory_space<vmem>>) attributes {dimension_semantics = [#tpu.dimension_semantics<parallel>], iteration_bounds = array<i64: 2>, scalar_prefetch = 0 : i64, scratch_operands = 0 : i64, tpu.core_type = #tpu.core_type<tc>, window_params = [{transform_indices = @transform_0, window_bounds = array<i64: 4, 8, 256>}, {transform_indices = @transform_1, window_bounds = array<i64: 4, 6, 256>}]} {
    %c0 = arith.constant 0 : index
    %c0_0 = arith.constant 0 : index
    %c0_1 = arith.constant 0 : index
    %0 = vector.load %arg1[%c0, %c0_0, %c0_1] : memref<4x8x256xf32, #tpu.memory_space<vmem>>, vector<4x6x256xf32>
    %cst = arith.constant 0.274068624 : f32
    %1 = vector.broadcast %cst : f32 to vector<4x6x256xf32>
    %2 = arith.mulf %1, %0 : vector<4x6x256xf32>
    %c0_2 = arith.constant 0 : index
    %c1 = arith.constant 1 : index
    %c0_3 = arith.constant 0 : index
    %3 = vector.load %arg1[%c0_2, %c1, %c0_3] : memref<4x8x256xf32, #tpu.memory_space<vmem>>, vector<4x6x256xf32>
    %cst_4 = arith.constant 0.451862752 : f32
    %4 = vector.broadcast %cst_4 : f32 to vector<4x6x256xf32>
    %5 = arith.mulf %4, %3 : vector<4x6x256xf32>
    %6 = arith.addf %2, %5 : vector<4x6x256xf32>
    %c0_5 = arith.constant 0 : index
    %c2 = arith.constant 2 : index
    %c0_6 = arith.constant 0 : index
    %7 = vector.load %arg1[%c0_5, %c2, %c0_6] : memref<4x8x256xf32, #tpu.memory_space<vmem>>, vector<4x6x256xf32>
    %cst_7 = arith.constant 0.274068624 : f32
    %8 = vector.broadcast %cst_7 : f32 to vector<4x6x256xf32>
    %9 = arith.mulf %8, %7 : vector<4x6x256xf32>
    %10 = arith.addf %6, %9 : vector<4x6x256xf32>
    %cst_8 = arith.constant 0.274068624 : f32
    %11 = vector.broadcast %cst_8 : f32 to vector<4x6x256xf32>
    %12 = arith.mulf %11, %10 : vector<4x6x256xf32>
    %c240_i32 = arith.constant 240 : i32
    %13 = tpu.dynamic_rotate %10 by %c240_i32 dim 2 : vector<4x6x256xf32>, i32 -> vector<4x6x256xf32>
    %cst_9 = arith.constant 0.451862752 : f32
    %14 = vector.broadcast %cst_9 : f32 to vector<4x6x256xf32>
    %15 = arith.mulf %14, %13 : vector<4x6x256xf32>
    %16 = arith.addf %12, %15 : vector<4x6x256xf32>
    %c224_i32 = arith.constant 224 : i32
    %17 = tpu.dynamic_rotate %10 by %c224_i32 dim 2 : vector<4x6x256xf32>, i32 -> vector<4x6x256xf32>
    %cst_10 = arith.constant 0.274068624 : f32
    %18 = vector.broadcast %cst_10 : f32 to vector<4x6x256xf32>
    %19 = arith.mulf %18, %17 : vector<4x6x256xf32>
    %20 = arith.addf %16, %19 : vector<4x6x256xf32>
    %cst_11 = arith.constant 0.274068624 : f32
    %21 = vector.broadcast %cst_11 : f32 to vector<4x6x256xf32>
    %22 = arith.mulf %21, %20 : vector<4x6x256xf32>
    %c255_i32 = arith.constant 255 : i32
    %23 = tpu.dynamic_rotate %20 by %c255_i32 dim 2 : vector<4x6x256xf32>, i32 -> vector<4x6x256xf32>
    %cst_12 = arith.constant 0.451862752 : f32
    %24 = vector.broadcast %cst_12 : f32 to vector<4x6x256xf32>
    %25 = arith.mulf %24, %23 : vector<4x6x256xf32>
    %26 = arith.addf %22, %25 : vector<4x6x256xf32>
    %c254_i32 = arith.constant 254 : i32
    %27 = tpu.dynamic_rotate %20 by %c254_i32 dim 2 : vector<4x6x256xf32>, i32 -> vector<4x6x256xf32>
    %cst_13 = arith.constant 0.274068624 : f32
    %28 = vector.broadcast %cst_13 : f32 to vector<4x6x256xf32>
    %29 = arith.mulf %28, %27 : vector<4x6x256xf32>
    %30 = arith.addf %26, %29 : vector<4x6x256xf32>
    %c0_14 = arith.constant 0 : index
    %c0_15 = arith.constant 0 : index
    %c0_16 = arith.constant 0 : index
    %31 = vector.load %arg2[%c0_14, %c0_15, %c0_16] : memref<4x6x256xf32, #tpu.memory_space<vmem>>, vector<4x6x256xf32>
    tpu.vector_store %arg2[%c0_14, %c0_15, %c0_16], %30 {strides = array<i32>} : memref<4x6x256xf32, #tpu.memory_space<vmem>>, vector<4x6x256xf32>,
    return
  }
  func.func @transform_0(%arg0: i32) -> (i32, i32, i32) {
    %c0_i32 = arith.constant 0 : i32
    %c0_i32_0 = arith.constant 0 : i32
    %c0_i32_1 = arith.constant 0 : i32
    return %arg0, %c0_i32, %c0_i32_0 : i32, i32, i32
  }
  func.func @transform_1(%arg0: i32) -> (i32, i32, i32) {
    %c0_i32 = arith.constant 0 : i32
    %c0_i32_0 = arith.constant 0 : i32
    %c0_i32_1 = arith.constant 0 : i32
    return %arg0, %c0_i32, %c0_i32_0 : i32, i32, i32
  }
}

</mosaic_0001>

<llo_original>
// kernel: tpu_custom_call.1
$region0: #{tpu_custom_call.1}
  #allocation0 [shape = 'u32[]', space=smem, size = 0x4, offset = 0x4, fixed_abs, tag = 'smem constant byte address 0x4 - core index']
  #allocation1 [shape = 'u32[144,128]{1,0:T(1,128)}', space=vmem, size = 0x12000, scoped, tag = 'internal scratch']
  %s0 = inlined_call_operand.hbm [shape: f32[8,8,256], index: 0, kind: input, shape index: {}]
  %s1 = inlined_call_operand.vmem [shape: f32[8,6,256], index: 1, kind: output, shape index: {}]
  %s2 = sld [smem:[#allocation0]]
  $region41: #{tpu_custom_call.1} parent=0
    _
  %s4 = ssub.s32 1, %s2
  %s5 = scalar_select 0, %s4, %s2
  $region1: #{tpu_custom_call.1} parent=0
    #allocation2 [shape = 'u8[65536]{0}', space=vmem, size = 0x10000, scoped, tag = 'input window, operand 0']
    #allocation3 [shape = 's32[2]{0}', space=sflag, size = 0x8, scoped, tag = 'scoped memory for tpu_custom_call.1']
    %6 = vsyncpa [#allocation3], 0
    %s7 = scalar_lea.sflag [#allocation3], 1
    %8 = vsyncpa %s7, 0
    loop: start=0, step=1, limit=4
    $region2: #{tpu_custom_call.1} parent=1 // loop_pre_header
      _
    $region3: #{tpu_custom_call.1} parent=1 // loop_header
      %s10 = sphi 0, %s14
      %p11 = scmp.ge.s32.totalorder %s10, 4
      %s20 = sphi 0, %s22
      %s23 = sphi 0, %s20
      %s24 = sphi 0, %s23
      %s40 = sphi 0, %s24
      %s46 = sphi 0, %s48
      %s49 = sphi 0, %s46
      %s50 = sphi 0, %s49
      %s66 = sphi 0, %s50
    $region4: #{tpu_custom_call.1} parent=1 // loop_header_branch
      %13 = sbr.rel (%p11) target = $region8
    $region5: #{tpu_custom_call.1} parent=1 // loop_body
      %s15 = ssub.s32 %s10, 1
      %s16 = ssub.s32 %s10, 2
      %s17 = sadd.s32 %s10, 1
      %s18 = ssub.s32 %s10, %s17
      %p19 = scmp.eq.s32.totalorder %s18, 0
      %s21 = sadd.s32 %s20, 1
      %s22 = scalar_select %p19, %s20, %s21
      %p25 = pneg %p19
      %p26 = scmp.eq.s32.totalorder %s10, 1
      %p27 = por %p25, %p26
      %p28 = scmp.ne.s32.totalorder %s20, %s23
      %p29 = scmp.eq.s32.totalorder %s10, 0
      %p30 = por %p28, %p29
      %p31 = scmp.ne.s32.totalorder %s20, %s23
      %p32 = scmp.eq.s32.totalorder %s15, 1
      %p33 = por %p31, %p32
      %p34 = scmp.ne.s32.totalorder %s23, %s24
      %p35 = scmp.eq.s32.totalorder %s15, 0
      %p36 = por %p34, %p35
      %p37 = scmp.ne.s32.totalorder %s23, %s24
      %p38 = scmp.eq.s32.totalorder %s16, 1
      %p39 = por %p37, %p38
      %p41 = scmp.ne.s32.totalorder %s24, %s40
      %p42 = scmp.eq.s32.totalorder %s16, 0
      %p43 = por %p41, %p42
      %s44 = ssub.s32 %s10, %s17
      %p45 = scmp.eq.s32.totalorder %s44, 0
      %s47 = sadd.s32 %s46, 1
      %s48 = scalar_select %p45, %s46, %s47
      %p51 = pneg %p45
      %p52 = scmp.eq.s32.totalorder %s10, 1
      %p53 = por %p51, %p52
      %p54 = scmp.ne.s32.totalorder %s46, %s49
      %p55 = scmp.eq.s32.totalorder %s10, 0
      %p56 = por %p54, %p55
      %p57 = scmp.ne.s32.totalorder %s46, %s49
      %p58 = scmp.eq.s32.totalorder %s15, 1
      %p59 = por %p57, %p58
      %p60 = scmp.ne.s32.totalorder %s49, %s50
      %p61 = scmp.eq.s32.totalorder %s15, 0
      %p62 = por %p60, %p61
      %p63 = scmp.ne.s32.totalorder %s49, %s50
      %p64 = scmp.eq.s32.totalorder %s16, 1
      %p65 = por %p63, %p64
      %p67 = scmp.ne.s32.totalorder %s50, %s66
      %p68 = scmp.eq.s32.totalorder %s16, 0
      %p69 = por %p67, %p68
      %p70 = scmp.le.s32.totalorder 1, %s10
      %p71 = scmp.lt.s32.totalorder %s10, 3
      %p72 = pnand %p70, %p71
      %p73 = pneg %p72
      // Predicated region
      $region9: #{tpu_custom_call.1} parent=5 // pred_check
        _
      $region10: #{tpu_custom_call.1} parent=5 // pred_check_branch
        %75 = sbr.rel (%p72) target = $region12
      $region11: #{tpu_custom_call.1} parent=5 // pred_region
        %s76 = ssub.s32 %s10, 1
      $region12: #{tpu_custom_call.1} parent=5 // pred_fallthru
        _
      %p77 = scmp.lt.s32.totalorder %s10, 2
      // Predicated region
      $region13: #{tpu_custom_call.1} parent=5 // pred_check
        %p78 = pneg %p77
      $region14: #{tpu_custom_call.1} parent=5 // pred_check_branch
        %80 = sbr.rel (%p78) target = $region16
      $region15: #{tpu_custom_call.1} parent=5 // pred_region
        // Predicated region
        $region17: #{tpu_custom_call.1} parent=15 // pred_check
          %p81 = pneg %p30
        $region18: #{tpu_custom_call.1} parent=15 // pred_check_branch
          %83 = sbr.rel (%p81) target = $region20
        $region19: #{tpu_custom_call.1} parent=15 // pred_region
          %s84 = sand.u32 %s20, 1
          %s85 = scalar_lea.sflag [#allocation3], %s84
          %s86 = sand.u32 %s20, 1
          %s87 = smul.addr %s86, 64
          %s88 = scalar_lea.vmem [#allocation2], %s87
          %s89 = smul.u32 4, %s10
          %s91 = ssub.s32 1024, 1024
          %92 = vsyncadd %s85, %s91
          %s93 = smul.addr %s89, 2
          %s94 = smul.addr %s93, 128
          %s95 = scalar_lea.hbm %s0, %s94
          %s96 = sshll.u32 %s88, 4
          %s97 = int_to_ptr.vmem [resolvable:$true] %s96
          %102 = dma.hbm_to_vmem [thread:$0]  %s95, 1024, %s97, %s85, 256, 256, 16
        $region20: #{tpu_custom_call.1} parent=15 // pred_fallthru
          _
      $region16: #{tpu_custom_call.1} parent=5 // pred_fallthru
        _
      %p103 = scmp.le.s32.totalorder 1, %s10
      %p104 = scmp.lt.s32.totalorder %s10, 3
      %p105 = pnand %p103, %p104
      %p106 = pneg %p105
      // Predicated region
      $region21: #{tpu_custom_call.1} parent=5 // pred_check
        _
      $region22: #{tpu_custom_call.1} parent=5 // pred_check_branch
        %108 = sbr.rel (%p105) target = $region24
      $region23: #{tpu_custom_call.1} parent=5 // pred_region
        %s109 = ssub.s32 %s10, 1
        %s110 = sand.u32 %s23, 1
        %s111 = scalar_lea.sflag [#allocation3], %s110
        %s112 = sand.u32 %s23, 1
        %s113 = smul.addr %s112, 64
        %s114 = scalar_lea.vmem [#allocation2], %s113
        // Predicated region
        $region25: #{tpu_custom_call.1} parent=23 // pred_check
          %p115 = pneg %p36
        $region26: #{tpu_custom_call.1} parent=23 // pred_check_branch
          %117 = sbr.rel (%p115) target = $region28
        $region27: #{tpu_custom_call.1} parent=23 // pred_region
          %118 = dma.done %s111, 1024
        $region28: #{tpu_custom_call.1} parent=23 // pred_fallthru
          _
        %s119 = sand.u32 %s23, 1
        %s120 = scalar_lea.sflag [#allocation3], %s119
        %s121 = sand.u32 %s23, 1
        %s122 = smul.addr %s121, 64
        %s123 = scalar_lea.vmem [#allocation2], %s122
        %p124 = pneg %p36
        %p125 = pneg %p33
        %p126 = pneg %p62
        %p127 = pneg %p59
        %s128 = smul.u32 4, %s15
        %p129 = scmp.lt.s32.totalorder %s128, 7
        %s130 = scalar_select %p129, %s128, 7
        %s131 = smul.addr %s130, 2
        %s132 = smul.addr %s131, 8
        %s133 = scalar_lea.vmem %s1, %s132
        %s134 = smul.u32 4, %s15
        %s135 = smul.u32 4, %s15
        %p136 = scmp.lt.s32.totalorder %s135, 7
        %s137 = scalar_select %p136, %s135, 7
        %s138 = smul.addr %s137, 2
        %s139 = smul.addr %s138, 8
        %s140 = scalar_lea.vmem %s1, %s139
        %s141 = smul.u32 4, %s15
        %v142 = vld [vmem:[%s114] sm:$0x3f]
        %v143 = vld [vmem:[%s114 + $0x8] sm:$0x3f]
        %v144 = vld [vmem:[%s114 + $0x10] sm:$0x3f]
        %v145 = vld [vmem:[%s114 + $0x18] sm:$0x3f]
        %v146 = vld [vmem:[%s114 + $0x20] sm:$0x3f]
        %v147 = vld [vmem:[%s114 + $0x28] sm:$0x3f]
        %v148 = vld [vmem:[%s114 + $0x30] sm:$0x3f]
        %v149 = vld [vmem:[%s114 + $0x38] sm:$0x3f]
        %v150 = vmul.f32 %v142, 0.27406862
        %v151 = vmul.f32 %v143, 0.27406862
        %v152 = vmul.f32 %v144, 0.27406862
        %v153 = vmul.f32 %v145, 0.27406862
        %v154 = vmul.f32 %v146, 0.27406862
        %v155 = vmul.f32 %v147, 0.27406862
        %v156 = vmul.f32 %v148, 0.27406862
        %v157 = vmul.f32 %v149, 0.27406862
        %v158 = vld [vmem:[%s114] sm:$0x7e]
        %v159 = vld [vmem:[%s114 + $0x8] sm:$0x7e]
        %v160 = vld [vmem:[%s114 + $0x10] sm:$0x7e]
        %v161 = vld [vmem:[%s114 + $0x18] sm:$0x7e]
        %v162 = vld [vmem:[%s114 + $0x20] sm:$0x7e]
        %v163 = vld [vmem:[%s114 + $0x28] sm:$0x7e]
        %v164 = vld [vmem:[%s114 + $0x30] sm:$0x7e]
        %v165 = vld [vmem:[%s114 + $0x38] sm:$0x7e]
        %v166 = vmul.f32 %v158, 0.45186275
        %v167 = vmul.f32 %v159, 0.45186275
        %v168 = vmul.f32 %v160, 0.45186275
        %v169 = vmul.f32 %v161, 0.45186275
        %v170 = vmul.f32 %v162, 0.45186275
        %v171 = vmul.f32 %v163, 0.45186275
        %v172 = vmul.f32 %v164, 0.45186275
        %v173 = vmul.f32 %v165, 0.45186275
        %v182 = vrot.slane %v166, 1
        %v183 = vrot.slane %v167, 1
        %v184 = vrot.slane %v168, 1
        %v185 = vrot.slane %v169, 1
        %v186 = vrot.slane %v170, 1
        %v187 = vrot.slane %v171, 1
        %v188 = vrot.slane %v172, 1
        %v189 = vrot.slane %v173, 1
        %v198 = vadd.f32 %v150, %v182
        %v199 = vadd.f32 %v151, %v183
        %v200 = vadd.f32 %v152, %v184
        %v201 = vadd.f32 %v153, %v185
        %v202 = vadd.f32 %v154, %v186
        %v203 = vadd.f32 %v155, %v187
        %v204 = vadd.f32 %v156, %v188
        %v205 = vadd.f32 %v157, %v189
        %v206 = vld [vmem:[%s114] sm:$0xfc]
        %v207 = vld [vmem:[%s114 + $0x8] sm:$0xfc]
        %v208 = vld [vmem:[%s114 + $0x10] sm:$0xfc]
        %v209 = vld [vmem:[%s114 + $0x18] sm:$0xfc]
        %v210 = vld [vmem:[%s114 + $0x20] sm:$0xfc]
        %v211 = vld [vmem:[%s114 + $0x28] sm:$0xfc]
        %v212 = vld [vmem:[%s114 + $0x30] sm:$0xfc]
        %v213 = vld [vmem:[%s114 + $0x38] sm:$0xfc]
        %v214 = vmul.f32 %v206, 0.27406862
        %v215 = vmul.f32 %v207, 0.27406862
        %v216 = vmul.f32 %v208, 0.27406862
        %v217 = vmul.f32 %v209, 0.27406862
        %v218 = vmul.f32 %v210, 0.27406862
        %v219 = vmul.f32 %v211, 0.27406862
        %v220 = vmul.f32 %v212, 0.27406862
        %v221 = vmul.f32 %v213, 0.27406862
        %v230 = vrot.slane %v214, 2
        %v231 = vrot.slane %v215, 2
        %v232 = vrot.slane %v216, 2
        %v233 = vrot.slane %v217, 2
        %v234 = vrot.slane %v218, 2
        %v235 = vrot.slane %v219, 2
        %v236 = vrot.slane %v220, 2
        %v237 = vrot.slane %v221, 2
        %v246 = vadd.f32 %v198, %v230
        %v247 = vadd.f32 %v199, %v231
        %v248 = vadd.f32 %v200, %v232
        %v249 = vadd.f32 %v201, %v233
        %v250 = vadd.f32 %v202, %v234
        %v251 = vadd.f32 %v203, %v235
        %v252 = vadd.f32 %v204, %v236
        %v253 = vadd.f32 %v205, %v237
        %v254 = vmul.f32 %v246, 0.27406862
        %v255 = vmul.f32 %v247, 0.27406862
        %v256 = vmul.f32 %v248, 0.27406862
        %v257 = vmul.f32 %v249, 0.27406862
        %v258 = vmul.f32 %v250, 0.27406862
        %v259 = vmul.f32 %v251, 0.27406862
        %v260 = vmul.f32 %v252, 0.27406862
        %v261 = vmul.f32 %v253, 0.27406862
        %262 = vrot.lane.b32.xlu0 %v246, 112
        %v263 = vpop.permute.xlu0 %262
        %264 = vrot.lane.b32.xlu0 %v248, 112
        %v265 = vpop.permute.xlu0 %264
        %266 = vrot.lane.b32.xlu0 %v250, 112
        %v267 = vpop.permute.xlu0 %266
        %268 = vrot.lane.b32.xlu0 %v252, 112
        %v269 = vpop.permute.xlu0 %268
        %270 = vrot.lane.b32.xlu0 %v247, 112
        %v271 = vpop.permute.xlu0 %270
        %272 = vrot.lane.b32.xlu0 %v249, 112
        %v273 = vpop.permute.xlu0 %272
        %274 = vrot.lane.b32.xlu0 %v251, 112
        %v275 = vpop.permute.xlu0 %274
        %276 = vrot.lane.b32.xlu0 %v253, 112
        %v277 = vpop.permute.xlu0 %276
        %v278 = vlaneseq
        %v279 = vand.u32 %v278, 127
        %vm280 = vcmp.lt.s32.totalorder %v279, 112
        %v281 = vsel %vm280, %v263, %v271
        %v282 = vsel %vm280, %v265, %v273
        %v283 = vsel %vm280, %v267, %v275
        %v284 = vsel %vm280, %v269, %v277
        %v285 = vsel %vm280, %v271, %v263
        %v286 = vsel %vm280, %v273, %v265
        %v287 = vsel %vm280, %v275, %v267
        %v288 = vsel %vm280, %v277, %v269
        %v289 = vmul.f32 %v281, 0.45186275
        %v290 = vmul.f32 %v285, 0.45186275
        %v291 = vmul.f32 %v282, 0.45186275
        %v292 = vmul.f32 %v286, 0.45186275
        %v293 = vmul.f32 %v283, 0.45186275
        %v294 = vmul.f32 %v287, 0.45186275
        %v295 = vmul.f32 %v284, 0.45186275
        %v296 = vmul.f32 %v288, 0.45186275
        %v297 = vadd.f32 %v254, %v289
        %v298 = vadd.f32 %v255, %v290
        %v299 = vadd.f32 %v256, %v291
        %v300 = vadd.f32 %v257, %v292
        %v301 = vadd.f32 %v258, %v293
        %v302 = vadd.f32 %v259, %v294
        %v303 = vadd.f32 %v260, %v295
        %v304 = vadd.f32 %v261, %v296
        %305 = vrot.lane.b32.xlu0 %v246, 96
        %v306 = vpop.permute.xlu0 %305
        %307 = vrot.lane.b32.xlu0 %v248, 96
        %v308 = vpop.permute.xlu0 %307
        %309 = vrot.lane.b32.xlu0 %v250, 96
        %v310 = vpop.permute.xlu0 %309
        %311 = vrot.lane.b32.xlu0 %v252, 96
        %v312 = vpop.permute.xlu0 %311
        %313 = vrot.lane.b32.xlu0 %v247, 96
        %v314 = vpop.permute.xlu0 %313
        %315 = vrot.lane.b32.xlu0 %v249, 96
        %v316 = vpop.permute.xlu0 %315
        %317 = vrot.lane.b32.xlu0 %v251, 96
        %v318 = vpop.permute.xlu0 %317
        %319 = vrot.lane.b32.xlu0 %v253, 96
        %v320 = vpop.permute.xlu0 %319
        %vm321 = vcmp.lt.s32.totalorder %v279, 96
        %v322 = vsel %vm321, %v306, %v314
        %v323 = vsel %vm321, %v308, %v316
        %v324 = vsel %vm321, %v310, %v318
        %v325 = vsel %vm321, %v312, %v320
        %v326 = vsel %vm321, %v314, %v306
        %v327 = vsel %vm321, %v316, %v308
        %v328 = vsel %vm321, %v318, %v310
        %v329 = vsel %vm321, %v320, %v312
        %v330 = vmul.f32 %v322, 0.27406862
        %v331 = vmul.f32 %v326, 0.27406862
        %v332 = vmul.f32 %v323, 0.27406862
        %v333 = vmul.f32 %v327, 0.27406862
        %v334 = vmul.f32 %v324, 0.27406862
        %v335 = vmul.f32 %v328, 0.27406862
        %v336 = vmul.f32 %v325, 0.27406862
        %v337 = vmul.f32 %v329, 0.27406862
        %v338 = vadd.f32 %v297, %v330
        %v339 = vadd.f32 %v298, %v331
        %v340 = vadd.f32 %v299, %v332
        %v341 = vadd.f32 %v300, %v333
        %v342 = vadd.f32 %v301, %v334
        %v343 = vadd.f32 %v302, %v335
        %v344 = vadd.f32 %v303, %v336
        %v345 = vadd.f32 %v304, %v337
        %v346 = vmul.f32 %v338, 0.27406862
        %v347 = vmul.f32 %v339, 0.27406862
        %v348 = vmul.f32 %v340, 0.27406862
        %v349 = vmul.f32 %v341, 0.27406862
        %v350 = vmul.f32 %v342, 0.27406862
        %v351 = vmul.f32 %v343, 0.27406862
        %v352 = vmul.f32 %v344, 0.27406862
        %v353 = vmul.f32 %v345, 0.27406862
        %354 = vrot.lane.b32.xlu0 %v338, 127
        %v355 = vpop.permute.xlu0 %354
        %356 = vrot.lane.b32.xlu0 %v340, 127
        %v357 = vpop.permute.xlu0 %356
        %358 = vrot.lane.b32.xlu0 %v342, 127
        %v359 = vpop.permute.xlu0 %358
        %360 = vrot.lane.b32.xlu0 %v344, 127
        %v361 = vpop.permute.xlu0 %360
        %362 = vrot.lane.b32.xlu0 %v339, 127
        %v363 = vpop.permute.xlu0 %362
        %364 = vrot.lane.b32.xlu0 %v341, 127
        %v365 = vpop.permute.xlu0 %364
        %366 = vrot.lane.b32.xlu0 %v343, 127
        %v367 = vpop.permute.xlu0 %366
        %368 = vrot.lane.b32.xlu0 %v345, 127
        %v369 = vpop.permute.xlu0 %368
        %vm370 = vcmp.lt.s32.totalorder %v279, 127
        %v371 = vsel %vm370, %v355, %v363
        %v372 = vsel %vm370, %v357, %v365
        %v373 = vsel %vm370, %v359, %v367
        %v374 = vsel %vm370, %v361, %v369
        %v375 = vsel %vm370, %v363, %v355
        %v376 = vsel %vm370, %v365, %v357
        %v377 = vsel %vm370, %v367, %v359
        %v378 = vsel %vm370, %v369, %v361
        %v379 = vmul.f32 %v371, 0.45186275
        %v380 = vmul.f32 %v375, 0.45186275
        %v381 = vmul.f32 %v372, 0.45186275
        %v382 = vmul.f32 %v376, 0.45186275
        %v383 = vmul.f32 %v373, 0.45186275
        %v384 = vmul.f32 %v377, 0.45186275
        %v385 = vmul.f32 %v374, 0.45186275
        %v386 = vmul.f32 %v378, 0.45186275
        %v387 = vadd.f32 %v346, %v379
        %v388 = vadd.f32 %v347, %v380
        %v389 = vadd.f32 %v348, %v381
        %v390 = vadd.f32 %v349, %v382
        %v391 = vadd.f32 %v350, %v383
        %v392 = vadd.f32 %v351, %v384
        %v393 = vadd.f32 %v352, %v385
        %v394 = vadd.f32 %v353, %v386
        %395 = vrot.lane.b32.xlu0 %v338, 126
        %v396 = vpop.permute.xlu0 %395
        %397 = vrot.lane.b32.xlu0 %v340, 126
        %v398 = vpop.permute.xlu0 %397
        %399 = vrot.lane.b32.xlu0 %v342, 126
        %v400 = vpop.permute.xlu0 %399
        %401 = vrot.lane.b32.xlu0 %v344, 126
        %v402 = vpop.permute.xlu0 %401
        %403 = vrot.lane.b32.xlu0 %v339, 126
        %v404 = vpop.permute.xlu0 %403
        %405 = vrot.lane.b32.xlu0 %v341, 126
        %v406 = vpop.permute.xlu0 %405
        %407 = vrot.lane.b32.xlu0 %v343, 126
        %v408 = vpop.permute.xlu0 %407
        %409 = vrot.lane.b32.xlu0 %v345, 126
        %v410 = vpop.permute.xlu0 %409
        %vm411 = vcmp.lt.s32.totalorder %v279, 126
        %v412 = vsel %vm411, %v396, %v404
        %v413 = vsel %vm411, %v398, %v406
        %v414 = vsel %vm411, %v400, %v408
        %v415 = vsel %vm411, %v402, %v410
        %v416 = vsel %vm411, %v404, %v396
        %v417 = vsel %vm411, %v406, %v398
        %v418 = vsel %vm411, %v408, %v400
        %v419 = vsel %vm411, %v410, %v402
        %v420 = vmul.f32 %v412, 0.27406862
        %v421 = vmul.f32 %v416, 0.27406862
        %v422 = vmul.f32 %v413, 0.27406862
        %v423 = vmul.f32 %v417, 0.27406862
        %v424 = vmul.f32 %v414, 0.27406862
        %v425 = vmul.f32 %v418, 0.27406862
        %v426 = vmul.f32 %v415, 0.27406862
        %v427 = vmul.f32 %v419, 0.27406862
        %v428 = vadd.f32 %v387, %v420
        %v429 = vadd.f32 %v388, %v421
        %v430 = vadd.f32 %v389, %v422
        %v431 = vadd.f32 %v390, %v423
        %v432 = vadd.f32 %v391, %v424
        %v433 = vadd.f32 %v392, %v425
        %v434 = vadd.f32 %v393, %v426
        %v435 = vadd.f32 %v394, %v427
        %436 = vst [vmem:[%s140] sm:$0x3f] %v428
        %437 = vst [vmem:[%s140 + $0x8] sm:$0x3f] %v429
        %438 = vst [vmem:[%s140 + $0x10] sm:$0x3f] %v430
        %439 = vst [vmem:[%s140 + $0x18] sm:$0x3f] %v431
        %440 = vst [vmem:[%s140 + $0x20] sm:$0x3f] %v432
        %441 = vst [vmem:[%s140 + $0x28] sm:$0x3f] %v433
        %442 = vst [vmem:[%s140 + $0x30] sm:$0x3f] %v434
        %443 = vst [vmem:[%s140 + $0x38] sm:$0x3f] %v435
        %s444 = smul.u32 4, %s15
        %p445 = scmp.lt.s32.totalorder %s444, 7
        %s446 = scalar_select %p445, %s444, 7
        %s447 = smul.addr %s446, 2
        %s448 = smul.addr %s447, 8
        %s449 = scalar_lea.vmem %s1, %s448
        // Predicated region
        $region29: #{tpu_custom_call.1} parent=23 // pred_check
          %p450 = pneg %p59
        $region30: #{tpu_custom_call.1} parent=23 // pred_check_branch
          %452 = sbr.rel (%p450) target = $region32
        $region31: #{tpu_custom_call.1} parent=23 // pred_region
          %s453 = smul.u32 4, %s15
        $region32: #{tpu_custom_call.1} parent=23 // pred_fallthru
          _
      $region24: #{tpu_custom_call.1} parent=5 // pred_fallthru
        _
      %p454 = scmp.le.s32.totalorder 2, %s10
      // Predicated region
      $region33: #{tpu_custom_call.1} parent=5 // pred_check
        %p455 = pneg %p454
      $region34: #{tpu_custom_call.1} parent=5 // pred_check_branch
        %457 = sbr.rel (%p455) target = $region36
      $region35: #{tpu_custom_call.1} parent=5 // pred_region
        %s458 = ssub.s32 %s10, 2
        // Predicated region
        $region37: #{tpu_custom_call.1} parent=35 // pred_check
          %p459 = pneg %p65
        $region38: #{tpu_custom_call.1} parent=35 // pred_check_branch
          %461 = sbr.rel (%p459) target = $region40
        $region39: #{tpu_custom_call.1} parent=35 // pred_region
          %s462 = smul.u32 4, %s16
          %p463 = scmp.lt.s32.totalorder %s462, 7
          %s464 = scalar_select %p463, %s462, 7
          %s465 = smul.addr %s464, 2
          %s466 = smul.addr %s465, 8
          %s467 = scalar_lea.vmem %s1, %s466
        $region40: #{tpu_custom_call.1} parent=35 // pred_fallthru
          _
      $region36: #{tpu_custom_call.1} parent=5 // pred_fallthru
        _
    $region6: #{tpu_custom_call.1} parent=1 // loop_footer
      %s14 = sadd.s32 1, %s10
    $region7: #{tpu_custom_call.1} parent=1 // loop_footer_branch
      %9 = sbr.rel target = $region3
    $region8: #{tpu_custom_call.1} parent=1 // loop_exit
      _
    %468 = vsyncpa [#allocation3], 1
    %s469 = scalar_lea.sflag [#allocation3], 1
    %470 = vsyncpa %s469, 1

</llo_original>
